<compile_context>
chip_gen: v7x
topology: tpu7x:2x2x1
jax: 0.10.0
libtpu: 0.0.40
codegen_flags: <defaults>
</compile_context>

<pallas_src>
import jax
import jax.numpy as jnp
from jax import lax
from jax.experimental import pallas as pl
from jax.experimental.pallas import tpu as pltpu

# Small, TPU-tile-friendly synthetic sizes.
B, N_OBS, VIS, H, S, VOCAB = 2, 4, 128, 128, 16, 256


def _default_grid_steps(batch):
    """1 grid step on single-TC chips (v5e/v6e); 2 on v7x so both TensorCores work."""
    try:
        kind = jax.devices()[0].device_kind.lower()
    except Exception:
        kind = ""
    num_tc = 2 if ("v7" in kind or "7x" in kind) else 1
    if num_tc > 1 and batch % num_tc == 0:
        return num_tc
    return 1


# --------------------- fused kernel: project + gather + splice ---------------------
def _fused_proj_splice_kernel(ids_ref, obs_ref, w_ref, embed_ref, out_ref):
    """One grid step = `rows` batch rows.

    ids_ref   : VMEM [rows, S, 1]     int32     token ids (-1 marks the dummy span)
    obs_ref   : VMEM [rows, N_OBS, VIS] bfloat16  visual features
    w_ref     : VMEM [H, VIS]         bfloat16  proj weight (untransposed)
    embed_ref : VMEM [VOCAB, H]       float32   token embedding table
    out_ref   : VMEM [rows, S, H]     float32   inputs_embeds
    """
    rows, n_obs, _vis = obs_ref.shape
    seq = ids_ref.shape[1]
    vocab, _hidden = embed_ref.shape

    # rows is tiny (<= B) and static, so this Python loop is fully unrolled.
    for r in range(rows):
        ids_col = ids_ref[r]                                        # (S, 1) int32

        # ---- 1) lane-dense one-hot embedding gather (VOCAB on the lane axis). ----
        # -1 (dummy) ids match no vocab row -> gathered row is exactly 0 there and
        # the projected obs embedding is added in step 4.
        vocab_iota = lax.broadcasted_iota(jnp.int32, (seq, vocab), 1)   # (S, VOCAB)
        onehot = (vocab_iota == ids_col).astype(jnp.float32)            # (S, VOCAB)
        gathered = lax.dot_general(                                     # (S, H)
            onehot, embed_ref[...],
            dimension_numbers=(((1,), (0,)), ((), ())),
            preferred_element_type=jnp.float32)

        # ---- 2) dummy_start via a vectorized reduce (no scalar SMEM scan). ----
        # Assumes (like the PyTorch module) a contiguous -1 span of length N_OBS.
        pos = lax.broadcasted_iota(jnp.int32, (seq, 1), 0)               # (S, 1)
        ds = jnp.min(jnp.where(ids_col == -1, pos, seq),
                     axis=0, keepdims=True)                              # (1, 1)

        # ---- 3) projection of this row's obs block: bf16 MXU, f32 accumulate. ----
        # Operands arrive pre-cast to bf16; contract on VIS (dim 1 of both) so the
        # wrapper never transposes the weight.
        obs_emb = lax.dot_general(                                       # (N_OBS, H)
            obs_ref[r], w_ref[...],
            dimension_numbers=(((1,), (1,)), ((), ())),
            preferred_element_type=jnp.float32)

        # ---- 4) add-based splice + ONE dense, unmasked (S, H) store. ----
        # place[p, j] = 1 iff position p is the j-th dummy slot; rows with no -1
        # span give ds == S, so `place` is all zero and nothing is overwritten.
        p_iota = lax.broadcasted_iota(jnp.int32, (seq, n_obs), 0)        # (S, N_OBS)
        j_iota = lax.broadcasted_iota(jnp.int32, (seq, n_obs), 1)        # (S, N_OBS)
        place = (p_iota == ds + j_iota).astype(jnp.float32)              # (S, N_OBS)
        spliced = gathered + lax.dot_general(                            # (S, H)
            place, obs_emb,
            dimension_numbers=(((1,), (0,)), ((), ())),
            preferred_element_type=jnp.float32)

        out_ref[r] = spliced.astype(out_ref.dtype)


def fused_proj_splice(input_ids, obs_feats, w_proj, embed_table, grid_steps=None):
    """inputs_embeds[b, p] = embed[input_ids[b, p]], except the contiguous -1 span,
    which is replaced by (obs_feats[b] @ w_proj^T) -- i.e. the torch.cat splice."""
    bsz, seq = input_ids.shape
    if grid_steps is None:
        grid_steps = _default_grid_steps(bsz)
    rows = bsz // grid_steps

    # Wrapper-side layout/dtype plumbing (free on the XLA side):
    ids3 = input_ids.astype(jnp.int32)[..., None]      # (B, S, 1): ids on sublanes
    obs_bf16 = obs_feats.astype(jnp.bfloat16)           # halve DMA/VMEM for projection
    w_bf16 = w_proj.astype(jnp.bfloat16)                 # grid-invariant, no per-step cast

    return pl.pallas_call(
        _fused_proj_splice_kernel,
        out_shape=jax.ShapeDtypeStruct((bsz, seq, H), jnp.float32),
        grid_spec=pltpu.PrefetchScalarGridSpec(
            num_scalar_prefetch=0,
            grid=(grid_steps,),
            in_specs=[
                pl.BlockSpec((rows, seq, 1), lambda g: (g, 0, 0)),
                pl.BlockSpec((rows, N_OBS, VIS), lambda g: (g, 0, 0)),
                pl.BlockSpec((H, VIS), lambda g: (0, 0)),        # grid-invariant
                pl.BlockSpec((VOCAB, H), lambda g: (0, 0)),      # grid-invariant
            ],
            out_specs=pl.BlockSpec((rows, seq, H), lambda g: (g, 0, 0)),
        ),
        compiler_params=pltpu.CompilerParams(dimension_semantics=("parallel",)),
    )(ids3, obs_bf16, w_bf16, embed_table)


# ----------------------------------- forward wrapper -----------------------------------
def proj_llama_forward(obs_feats, input_ids, labels, attention_mask, w_proj, embed_table):
    # Everything on the Pallas side happens in one fused kernel.
    inputs_embeds = fused_proj_splice(input_ids, obs_feats, w_proj, embed_table)
    # labels / attention_mask are pass-throughs consumed only by the frozen LLaMA decoder.
    return inputs_embeds


# -------------------------------------- reference --------------------------------------
def reference_forward(obs_feats, input_ids, w_proj, embed_table):
    obs_embs = jnp.einsum("bnv,hv->bnh", obs_feats, w_proj)
    outs = []
    for i in range(B):
        ids = input_ids[i]
        dummy_pos = jnp.where(ids == -1)[0]
        ds, de = int(dummy_pos[0]), int(dummy_pos[-1])
        emb_start = embed_table[ids[:ds]]
        emb_end = embed_table[ids[de + 1:]]
        outs.append(jnp.concatenate([emb_start, obs_embs[i], emb_end], axis=0))
    return jnp.stack(outs, axis=0)


if __name__ == "__main__":
    key = jax.random.PRNGKey(0)
    k1, k2, k3, k4 = jax.random.split(key, 4)

    obs_feats = jax.random.normal(k1, (B, N_OBS, VIS), jnp.float32)
    w_proj = 0.02 * jax.random.normal(k2, (H, VIS), jnp.float32)         # nn.Linear(vis, H).weight
    embed_table = 0.02 * jax.random.normal(k3, (VOCAB, H), jnp.float32)  # embed_tokens.weight

    tok = jax.random.randint(k4, (B, S), 0, VOCAB, jnp.int32)
    dummy_starts = [5, 3]  # contiguous span of N_OBS dummy (-1) tokens per batch row
    rows = []
    for i in range(B):
        row = tok[i].at[dummy_starts[i]:dummy_starts[i] + N_OBS].set(-1)
        rows.append(row)
    input_ids = jnp.stack(rows, axis=0)
    labels = jnp.where(input_ids == -1, -100, input_ids)     # pass-through (consumed by llama only)
    attention_mask = jnp.ones((B, S), jnp.int32)              # pass-through (consumed by llama only)

    out = proj_llama_forward(obs_feats, input_ids, labels, attention_mask, w_proj, embed_table)
    jax.block_until_ready(out)

    ref = reference_forward(obs_feats, input_ids, w_proj, embed_table)
    assert out.shape == (B, S, H)
    # Gathered rows are near-exact (f32 multi-pass matmul); the projected span uses
    # the bf16 MXU path (f32 accumulate), so allow ~1e-3-level rounding there.
    assert jnp.allclose(out, ref, atol=1e-2, rtol=1e-2), "mismatch vs reference"
    print("KERNEL_OK")
</pallas_src>

<mosaic_0001>
module attributes {stable_mosaic.version = 11 : i64} {
  func.func @_fused_proj_splice_kernel(%arg0: i32, %arg1: memref<2x16x1xi32, #tpu.memory_space<vmem>>, %arg2: memref<2x4x128xbf16, #tpu.memory_space<vmem>>, %arg3: memref<128x128xbf16, #tpu.memory_space<vmem>>, %arg4: memref<256x128xf32, #tpu.memory_space<vmem>>, %arg5: memref<2x16x128xf32, #tpu.memory_space<vmem>>) attributes {dimension_semantics = [#tpu.dimension_semantics<parallel>], iteration_bounds = array<i64: 1>, scalar_prefetch = 0 : i64, scratch_operands = 0 : i64, tpu.core_type = #tpu.core_type<tc>, window_params = [{transform_indices = @transform_0, window_bounds = array<i64: 2, 16, 1>}, {transform_indices = @transform_1, window_bounds = array<i64: 2, 4, 128>}, {pipeline_mode = #tpu.pipeline_mode<synchronous>, transform_indices = @transform_2, window_bounds = array<i64: 128, 128>}, {pipeline_mode = #tpu.pipeline_mode<synchronous>, transform_indices = @transform_3, window_bounds = array<i64: 256, 128>}, {transform_indices = @transform_4, window_bounds = array<i64: 2, 16, 128>}]} {
    %c0 = arith.constant 0 : index
    %c0_0 = arith.constant 0 : index
    %c0_1 = arith.constant 0 : index
    %0 = vector.load %arg1[%c0, %c0_0, %c0_1] : memref<2x16x1xi32, #tpu.memory_space<vmem>>, vector<1x16x1xi32>
    %1 = vector.shape_cast %0 : vector<1x16x1xi32> to vector<16x1xi32>
    %2 = tpu.iota {dimensions = array<i32: 1>} : vector<16x256xi32>
    %3 = vector.broadcast %1 : vector<16x1xi32> to vector<16x256xi32>
    %4 = arith.cmpi eq, %2, %3 : vector<16x256xi32>
    %5 = arith.extui %4 : vector<16x256xi1> to vector<16x256xi32>
    %6 = arith.sitofp %5 : vector<16x256xi32> to vector<16x256xf32>
    %c0_2 = arith.constant 0 : index
    %c0_3 = arith.constant 0 : index
    %7 = vector.load %arg4[%c0_2, %c0_3] : memref<256x128xf32, #tpu.memory_space<vmem>>, vector<256x128xf32>
    %cst = arith.constant dense<0.000000e+00> : vector<16x128xf32>
    %8 = tpu.matmul %6, %7, %cst {dimension_numbers = #tpu.dot_dimension_numbers<[1], [0], [0], [1], [0, 0, 1, 1], [], []>} : vector<16x256xf32>, vector<256x128xf32>, vector<16x128xf32> -> vector<16x128xf32>
    %9 = tpu.iota {dimensions = array<i32: 0>} : vector<16x1xi32>
    %c-1_i32 = arith.constant -1 : i32
    %10 = vector.broadcast %c-1_i32 : i32 to vector<16x1xi32>
    %11 = arith.cmpi eq, %1, %10 : vector<16x1xi32>
    %c16_i32 = arith.constant 16 : i32
    %12 = vector.broadcast %c16_i32 : i32 to vector<16x1xi32>
    %13 = arith.select %11, %9, %12 : vector<16x1xi1>, vector<16x1xi32>
    %cst_4 = arith.constant dense<2147483647> : vector<1xi32>
    %14 = vector.multi_reduction <minsi>, %13, %cst_4 [0] : vector<16x1xi32> to vector<1xi32>
    %15 = vector.shape_cast %14 : vector<1xi32> to vector<1x1xi32>
    %c0_5 = arith.constant 0 : index
    %c0_6 = arith.constant 0 : index
    %c0_7 = arith.constant 0 : index
    %16 = vector.load %arg2[%c0_5, %c0_6, %c0_7] : memref<2x4x128xbf16, #tpu.memory_space<vmem>>, vector<1x4x128xbf16>
    %17 = vector.shape_cast %16 : vector<1x4x128xbf16> to vector<4x128xbf16>
    %c0_8 = arith.constant 0 : index
    %c0_9 = arith.constant 0 : index
    %18 = vector.load %arg3[%c0_8, %c0_9] : memref<128x128xbf16, #tpu.memory_space<vmem>>, vector<128x128xbf16>
    %cst_10 = arith.constant dense<0.000000e+00> : vector<4x128xf32>
    %19 = tpu.matmul %17, %18, %cst_10 {dimension_numbers = #tpu.dot_dimension_numbers<[1], [1], [0], [0], [0, 0, 1, 0], [], []>} : vector<4x128xbf16>, vector<128x128xbf16>, vector<4x128xf32> -> vector<4x128xf32>
    %20 = tpu.iota {dimensions = array<i32: 0>} : vector<16x4xi32>
    %21 = tpu.iota {dimensions = array<i32: 1>} : vector<16x4xi32>
    %22 = vector.broadcast %15 : vector<1x1xi32> to vector<16x4xi32>
    %23 = arith.addi %22, %21 : vector<16x4xi32>
    %24 = arith.cmpi eq, %20, %23 : vector<16x4xi32>
    %25 = arith.extui %24 : vector<16x4xi1> to vector<16x4xi32>
    %26 = arith.sitofp %25 : vector<16x4xi32> to vector<16x4xf32>
    %cst_11 = arith.constant dense<0.000000e+00> : vector<16x128xf32>
    %27 = tpu.matmul %26, %19, %cst_11 {dimension_numbers = #tpu.dot_dimension_numbers<[1], [0], [0], [1], [0, 0, 1, 1], [], []>} : vector<16x4xf32>, vector<4x128xf32>, vector<16x128xf32> -> vector<16x128xf32>
    %28 = arith.addf %8, %27 : vector<16x128xf32>
    %c0_12 = arith.constant 0 : index
    %c0_13 = arith.constant 0 : index
    %c0_14 = arith.constant 0 : index
    %29 = vector.load %arg5[%c0_12, %c0_13, %c0_14] : memref<2x16x128xf32, #tpu.memory_space<vmem>>, vector<1x16x128xf32>
    %30 = vector.shape_cast %29 : vector<1x16x128xf32> to vector<16x128xf32>
    %31 = vector.shape_cast %28 : vector<16x128xf32> to vector<1x16x128xf32>
    tpu.vector_store %arg5[%c0_12, %c0_13, %c0_14], %31 {strides = array<i32>} : memref<2x16x128xf32, #tpu.memory_space<vmem>>, vector<1x16x128xf32>,
    %c1 = arith.constant 1 : index
    %c0_15 = arith.constant 0 : index
    %c0_16 = arith.constant 0 : index
    %32 = vector.load %arg1[%c1, %c0_15, %c0_16] : memref<2x16x1xi32, #tpu.memory_space<vmem>>, vector<1x16x1xi32>
    %33 = vector.shape_cast %32 : vector<1x16x1xi32> to vector<16x1xi32>
    %34 = tpu.iota {dimensions = array<i32: 1>} : vector<16x256xi32>
    %35 = vector.broadcast %33 : vector<16x1xi32> to vector<16x256xi32>
    %36 = arith.cmpi eq, %34, %35 : vector<16x256xi32>
    %37 = arith.extui %36 : vector<16x256xi1> to vector<16x256xi32>
    %38 = arith.sitofp %37 : vector<16x256xi32> to vector<16x256xf32>
    %c0_17 = arith.constant 0 : index
    %c0_18 = arith.constant 0 : index
    %39 = vector.load %arg4[%c0_17, %c0_18] : memref<256x128xf32, #tpu.memory_space<vmem>>, vector<256x128xf32>
    %cst_19 = arith.constant dense<0.000000e+00> : vector<16x128xf32>
    %40 = tpu.matmul %38, %39, %cst_19 {dimension_numbers = #tpu.dot_dimension_numbers<[1], [0], [0], [1], [0, 0, 1, 1], [], []>} : vector<16x256xf32>, vector<256x128xf32>, vector<16x128xf32> -> vector<16x128xf32>
    %41 = tpu.iota {dimensions = array<i32: 0>} : vector<16x1xi32>
    %c-1_i32_20 = arith.constant -1 : i32
    %42 = vector.broadcast %c-1_i32_20 : i32 to vector<16x1xi32>
    %43 = arith.cmpi eq, %33, %42 : vector<16x1xi32>
    %c16_i32_21 = arith.constant 16 : i32
    %44 = vector.broadcast %c16_i32_21 : i32 to vector<16x1xi32>
    %45 = arith.select %43, %41, %44 : vector<16x1xi1>, vector<16x1xi32>
    %cst_22 = arith.constant dense<2147483647> : vector<1xi32>
    %46 = vector.multi_reduction <minsi>, %45, %cst_22 [0] : vector<16x1xi32> to vector<1xi32>
    %47 = vector.shape_cast %46 : vector<1xi32> to vector<1x1xi32>
    %c1_23 = arith.constant 1 : index
    %c0_24 = arith.constant 0 : index
    %c0_25 = arith.constant 0 : index
    %48 = vector.load %arg2[%c1_23, %c0_24, %c0_25] : memref<2x4x128xbf16, #tpu.memory_space<vmem>>, vector<1x4x128xbf16>
    %49 = vector.shape_cast %48 : vector<1x4x128xbf16> to vector<4x128xbf16>
    %c0_26 = arith.constant 0 : index
    %c0_27 = arith.constant 0 : index
    %50 = vector.load %arg3[%c0_26, %c0_27] : memref<128x128xbf16, #tpu.memory_space<vmem>>, vector<128x128xbf16>
    %cst_28 = arith.constant dense<0.000000e+00> : vector<4x128xf32>
    %51 = tpu.matmul %49, %50, %cst_28 {dimension_numbers = #tpu.dot_dimension_numbers<[1], [1], [0], [0], [0, 0, 1, 0], [], []>} : vector<4x128xbf16>, vector<128x128xbf16>, vector<4x128xf32> -> vector<4x128xf32>
    %52 = tpu.iota {dimensions = array<i32: 0>} : vector<16x4xi32>
    %53 = tpu.iota {dimensions = array<i32: 1>} : vector<16x4xi32>
    %54 = vector.broadcast %47 : vector<1x1xi32> to vector<16x4xi32>
    %55 = arith.addi %54, %53 : vector<16x4xi32>
    %56 = arith.cmpi eq, %52, %55 : vector<16x4xi32>
    %57 = arith.extui %56 : vector<16x4xi1> to vector<16x4xi32>
    %58 = arith.sitofp %57 : vector<16x4xi32> to vector<16x4xf32>
    %cst_29 = arith.constant dense<0.000000e+00> : vector<16x128xf32>
    %59 = tpu.matmul %58, %51, %cst_29 {dimension_numbers = #tpu.dot_dimension_numbers<[1], [0], [0], [1], [0, 0, 1, 1], [], []>} : vector<16x4xf32>, vector<4x128xf32>, vector<16x128xf32> -> vector<16x128xf32>
    %60 = arith.addf %40, %59 : vector<16x128xf32>
    %c1_30 = arith.constant 1 : index
    %c0_31 = arith.constant 0 : index
    %c0_32 = arith.constant 0 : index
    %61 = vector.load %arg5[%c1_30, %c0_31, %c0_32] : memref<2x16x128xf32, #tpu.memory_space<vmem>>, vector<1x16x128xf32>
    %62 = vector.shape_cast %61 : vector<1x16x128xf32> to vector<16x128xf32>
    %63 = vector.shape_cast %60 : vector<16x128xf32> to vector<1x16x128xf32>
    tpu.vector_store %arg5[%c1_30, %c0_31, %c0_32], %63 {strides = array<i32>} : memref<2x16x128xf32, #tpu.memory_space<vmem>>, vector<1x16x128xf32>,
    return
  }
  func.func @transform_0(%arg0: i32) -> (i32, i32, i32) {
    %c0_i32 = arith.constant 0 : i32
    %c0_i32_0 = arith.constant 0 : i32
    %c0_i32_1 = arith.constant 0 : i32
    return %arg0, %c0_i32, %c0_i32_0 : i32, i32, i32
  }
  func.func @transform_1(%arg0: i32) -> (i32, i32, i32) {
    %c0_i32 = arith.constant 0 : i32
    %c0_i32_0 = arith.constant 0 : i32
    %c0_i32_1 = arith.constant 0 : i32
    return %arg0, %c0_i32, %c0_i32_0 : i32, i32, i32
  }
  func.func @transform_2(%arg0: i32) -> (i32, i32) {
    %c0_i32 = arith.constant 0 : i32
    %c0_i32_0 = arith.constant 0 : i32
    %c0_i32_1 = arith.constant 0 : i32
    return %c0_i32, %c0_i32_0 : i32, i32
  }
  func.func @transform_3(%arg0: i32) -> (i32, i32) {
    %c0_i32 = arith.constant 0 : i32
    %c0_i32_0 = arith.constant 0 : i32
    %c0_i32_1 = arith.constant 0 : i32
    return %c0_i32, %c0_i32_0 : i32, i32
  }
  func.func @transform_4(%arg0: i32) -> (i32, i32, i32) {
    %c0_i32 = arith.constant 0 : i32
    %c0_i32_0 = arith.constant 0 : i32
    %c0_i32_1 = arith.constant 0 : i32
    return %arg0, %c0_i32, %c0_i32_0 : i32, i32, i32
  }
}

</mosaic_0001>

<llo_original>
// kernel: tpu_custom_call.1
$region0: #{tpu_custom_call.1}
  #allocation0 [shape = 'u32[]', space=smem, size = 0x4, offset = 0x4, fixed_abs, tag = 'smem constant byte address 0x4 - core index']
  #allocation1 [shape = 'u32[144,128]{1,0:T(1,128)}', space=vmem, size = 0x12000, scoped, tag = 'internal scratch']
  %s0 = inlined_call_operand.vmem [shape: s32[2,16,1], index: 0, kind: input, shape index: {}]
  %s1 = inlined_call_operand.vmem [shape: bf16[2,4,128], index: 1, kind: input, shape index: {}]
  %s2 = inlined_call_operand.hbm [shape: bf16[128,128], index: 2, kind: input, shape index: {}]
  %s3 = inlined_call_operand.hbm [shape: f32[256,128], index: 3, kind: input, shape index: {}]
  %s4 = inlined_call_operand.hbm [shape: f32[2,16,128], index: 4, kind: output, shape index: {}]
  %s5 = sld [smem:[#allocation0]]
  $region34: #{tpu_custom_call.1} parent=0
    _
  %s7 = ssub.s32 1, %s5
  %s8 = scalar_select 0, %s7, %s5
  $region1: #{tpu_custom_call.1} parent=0
    #allocation2 [shape = 'u8[32768]{0}', space=vmem, size = 0x8000, scoped, tag = 'input window, operand 2, single buffered']
    #allocation3 [shape = 's32[1]{0}', space=sflag, size = 0x4, scoped, tag = 'scoped memory for tpu_custom_call.1']
    #allocation4 [shape = 's32[1]{0}', space=sflag, size = 0x4, scoped, tag = 'scoped memory for tpu_custom_call.1']
    #allocation5 [shape = 'u8[131072]{0}', space=vmem, size = 0x20000, scoped, tag = 'input window, operand 3, single buffered']
    #allocation6 [shape = 's32[1]{0}', space=sflag, size = 0x4, scoped, tag = 'scoped memory for tpu_custom_call.1']
    #allocation7 [shape = 'u8[16384]{0}', space=vmem, size = 0x4000, scoped, tag = 'output window, operand 0, single buffered']
    %9 = vsyncpa [#allocation3], 0
    %10 = vsyncpa [#allocation6], 0
    %11 = vsyncpa [#allocation4], 0
    // Predicated region
    $region2: #{tpu_custom_call.1} parent=1 // pred_check
      _
    $region3: #{tpu_custom_call.1} parent=1 // pred_check_branch
      %13 = sbr.rel (0) target = $region5
    $region4: #{tpu_custom_call.1} parent=1 // pred_region
      _
    $region5: #{tpu_custom_call.1} parent=1 // pred_fallthru
      _
    // Predicated region
    $region6: #{tpu_custom_call.1} parent=1 // pred_check
      _
    $region7: #{tpu_custom_call.1} parent=1 // pred_check_branch
      %15 = sbr.rel (0) target = $region9
    $region8: #{tpu_custom_call.1} parent=1 // pred_region
      _
    $region9: #{tpu_custom_call.1} parent=1 // pred_fallthru
      _
    // Predicated region
    $region10: #{tpu_custom_call.1} parent=1 // pred_check
      _
    $region11: #{tpu_custom_call.1} parent=1 // pred_check_branch
      %17 = sbr.rel (0) target = $region13
    $region12: #{tpu_custom_call.1} parent=1 // pred_region
      %s19 = ssub.s32 1024, 1024
      %20 = vsyncadd [#allocation3], %s19
      %s21 = sshll.u32 [#allocation2], 4
      %s22 = int_to_ptr.vmem [resolvable:$true] %s21
      %27 = dma.hbm_to_vmem [thread:$0]  %s2, 1024, %s22, [#allocation3], 64, 64, 4
    $region13: #{tpu_custom_call.1} parent=1 // pred_fallthru
      _
    // Predicated region
    $region14: #{tpu_custom_call.1} parent=1 // pred_check
      _
    $region15: #{tpu_custom_call.1} parent=1 // pred_check_branch
      %29 = sbr.rel (0) target = $region17
    $region16: #{tpu_custom_call.1} parent=1 // pred_region
      %s31 = ssub.s32 4096, 4096
      %32 = vsyncadd [#allocation6], %s31
      %s33 = sshll.u32 [#allocation5], 4
      %s34 = int_to_ptr.vmem [resolvable:$true] %s33
      %39 = dma.hbm_to_vmem [thread:$0]  %s3, 4096, %s34, [#allocation6], 128, 128, 8
    $region17: #{tpu_custom_call.1} parent=1 // pred_fallthru
      _
    // Predicated region
    $region18: #{tpu_custom_call.1} parent=1 // pred_check
      _
    $region19: #{tpu_custom_call.1} parent=1 // pred_check_branch
      %41 = sbr.rel (0) target = $region21
    $region20: #{tpu_custom_call.1} parent=1 // pred_region
      %42 = dma.done [#allocation3], 1024
    $region21: #{tpu_custom_call.1} parent=1 // pred_fallthru
      _
    // Predicated region
    $region22: #{tpu_custom_call.1} parent=1 // pred_check
      _
    $region23: #{tpu_custom_call.1} parent=1 // pred_check_branch
      %44 = sbr.rel (0) target = $region25
    $region24: #{tpu_custom_call.1} parent=1 // pred_region
      %45 = dma.done [#allocation6], 4096
    $region25: #{tpu_custom_call.1} parent=1 // pred_fallthru
      _
    %v47 = vld [vmem:[%s0] sm:$0xff]
    %v48 = vld [vmem:[%s0 + $0x8] sm:$0xff]
    %v49 = vlaneseq
    %v50 = vand.u32 %v49, 127
    %v51 = vadd.s32 %v50, 128
    %52 = vset.pattern.permute.xlu0 0
    %53 = vperm.xlu0 %52, %v47
    %v54 = vpop.permute.xlu0 %53
    %55 = vset.pattern.permute.xlu0 0
    %56 = vperm.xlu0 %55, %v48
    %v57 = vpop.permute.xlu0 %56
    %vm58 = vcmp.eq.s32.totalorder %v50, %v54
    %vm59 = vcmp.eq.s32.totalorder %v51, %v54
    %vm60 = vcmp.eq.s32.totalorder %v50, %v57
    %vm61 = vcmp.eq.s32.totalorder %v51, %v57
    %v62 = vsel %vm58, 1, 0
    %v63 = vsel %vm59, 1, 0
    %v64 = vsel %vm60, 1, 0
    %v65 = vsel %vm61, 1, 0
    %v66 = vcvt.s32.f32 %v62
    %v67 = vcvt.s32.f32 %v63
    %v68 = vcvt.s32.f32 %v64
    %v69 = vcvt.s32.f32 %v65
    %v70 = vld [vmem:[#allocation5] sm:$0xff]
    %v71 = vld [vmem:[#allocation5 + $0x8] sm:$0xff]
    %v72 = vld [vmem:[#allocation5 + $0x10] sm:$0xff]
    %v73 = vld [vmem:[#allocation5 + $0x18] sm:$0xff]
    %v74 = vld [vmem:[#allocation5 + $0x20] sm:$0xff]
    %v75 = vld [vmem:[#allocation5 + $0x28] sm:$0xff]
    %v76 = vld [vmem:[#allocation5 + $0x30] sm:$0xff]
    %v77 = vld [vmem:[#allocation5 + $0x38] sm:$0xff]
    %v78 = vld [vmem:[#allocation5 + $0x40] sm:$0xff]
    %v79 = vld [vmem:[#allocation5 + $0x48] sm:$0xff]
    %v80 = vld [vmem:[#allocation5 + $0x50] sm:$0xff]
    %v81 = vld [vmem:[#allocation5 + $0x58] sm:$0xff]
    %v82 = vld [vmem:[#allocation5 + $0x60] sm:$0xff]
    %v83 = vld [vmem:[#allocation5 + $0x68] sm:$0xff]
    %v84 = vld [vmem:[#allocation5 + $0x70] sm:$0xff]
    %v85 = vld [vmem:[#allocation5 + $0x78] sm:$0xff]
    %v86 = vld [vmem:[#allocation5 + $0x80] sm:$0xff]
    %v87 = vld [vmem:[#allocation5 + $0x88] sm:$0xff]
    %v88 = vld [vmem:[#allocation5 + $0x90] sm:$0xff]
    %v89 = vld [vmem:[#allocation5 + $0x98] sm:$0xff]
    %v90 = vld [vmem:[#allocation5 + $0xa0] sm:$0xff]
    %v91 = vld [vmem:[#allocation5 + $0xa8] sm:$0xff]
    %v92 = vld [vmem:[#allocation5 + $0xb0] sm:$0xff]
    %v93 = vld [vmem:[#allocation5 + $0xb8] sm:$0xff]
    %v94 = vld [vmem:[#allocation5 + $0xc0] sm:$0xff]
    %v95 = vld [vmem:[#allocation5 + $0xc8] sm:$0xff]
    %v96 = vld [vmem:[#allocation5 + $0xd0] sm:$0xff]
    %v97 = vld [vmem:[#allocation5 + $0xd8] sm:$0xff]
    %v98 = vld [vmem:[#allocation5 + $0xe0] sm:$0xff]
    %v99 = vld [vmem:[#allocation5 + $0xe8] sm:$0xff]
    %v100 = vld [vmem:[#allocation5 + $0xf0] sm:$0xff]
    %v101 = vld [vmem:[#allocation5 + $0xf8] sm:$0xff]
    %v102 = vlaneseq
    %v103 = vshrl.u32 %v102, 7
    %v104 = vadd.s32 %v103, 8
    %vm105 = vcmp.eq.s32.totalorder %v47, 4294967295
    %vm106 = vcmp.eq.s32.totalorder %v48, 4294967295
    %v107 = vsel %vm105, %v103, 16
    %v108 = vsel %vm106, %v104, 16
    %vm109 = vcmask 7168
    %v110 = vsel %vm109, %v107, 2147483647
    %v111 = vsel %vm109, %v108, 2147483647
    %vm112 = vcmp.lt.s32.totalorder %v110, %v111
    %v113 = vsel %vm112, %v110, %v111
    %v114 = vrot.slane %v113, 4
    %vm115 = vcmp.lt.s32.totalorder %v113, %v114
    %v116 = vsel %vm115, %v113, %v114
    %v117 = vrot.slane %v116, 2
    %vm118 = vcmp.lt.s32.totalorder %v116, %v117
    %v119 = vsel %vm118, %v116, %v117
    %v120 = vrot.slane %v119, 1
    %vm121 = vcmp.lt.s32.totalorder %v119, %v120
    %v122 = vsel %vm121, %v119, %v120
    %v123 = vld [vmem:[%s1] sm:$0x3]
    %v124 = vld [vmem:[#allocation2] sm:$0xf]
    %v125 = vld [vmem:[#allocation2 + $0x4] sm:$0xf]
    %v126 = vld [vmem:[#allocation2 + $0x8] sm:$0xf]
    %v127 = vld [vmem:[#allocation2 + $0xc] sm:$0xf]
    %v128 = vld [vmem:[#allocation2 + $0x10] sm:$0xf]
    %v129 = vld [vmem:[#allocation2 + $0x14] sm:$0xf]
    %v130 = vld [vmem:[#allocation2 + $0x18] sm:$0xf]
    %v131 = vld [vmem:[#allocation2 + $0x1c] sm:$0xf]
    %v132 = vld [vmem:[#allocation2 + $0x20] sm:$0xf]
    %v133 = vld [vmem:[#allocation2 + $0x24] sm:$0xf]
    %v134 = vld [vmem:[#allocation2 + $0x28] sm:$0xf]
    %v135 = vld [vmem:[#allocation2 + $0x2c] sm:$0xf]
    %v136 = vld [vmem:[#allocation2 + $0x30] sm:$0xf]
    %v137 = vld [vmem:[#allocation2 + $0x34] sm:$0xf]
    %v138 = vld [vmem:[#allocation2 + $0x38] sm:$0xf]
    %v139 = vld [vmem:[#allocation2 + $0x3c] sm:$0xf]
    %v156 = vunpack.c.l.b16 %v124
    %v157 = vunpack.c.l.b16 %v125
    %v158 = vunpack.c.l.b16 %v126
    %v159 = vunpack.c.l.b16 %v127
    %v160 = vunpack.c.l.b16 %v128
    %v161 = vunpack.c.l.b16 %v129
    %v162 = vunpack.c.l.b16 %v130
    %v163 = vunpack.c.l.b16 %v131
    %v164 = vunpack.c.l.b16 %v132
    %v165 = vunpack.c.l.b16 %v133
    %v166 = vunpack.c.l.b16 %v134
    %v167 = vunpack.c.l.b16 %v135
    %v168 = vunpack.c.l.b16 %v136
    %v169 = vunpack.c.l.b16 %v137
    %v170 = vunpack.c.l.b16 %v138
    %v171 = vunpack.c.l.b16 %v139
    %v172 = vpack.c.b16 %v157, %v156
    %v173 = vpack.c.b16 %v159, %v158
    %v174 = vpack.c.b16 %v161, %v160
    %v175 = vpack.c.b16 %v163, %v162
    %v176 = vpack.c.b16 %v165, %v164
    %v177 = vpack.c.b16 %v167, %v166
    %v178 = vpack.c.b16 %v169, %v168
    %v179 = vpack.c.b16 %v171, %v170
    %188 = vmatprep.subr.bf16.mxu0 0
    %189 = vmatpush1.bf16.xpose.msra.mxu0 %v172
    %190 = vmatprep.subr.bf16.mxu0 0
    %191 = vmatpush1.bf16.xpose.msra.mxu0 %v173
    %192 = vmatprep.subr.bf16.mxu0 0
    %193 = vmatpush1.bf16.xpose.msra.mxu0 %v174
    %194 = vmatprep.subr.bf16.mxu0 0
    %195 = vmatpush1.bf16.xpose.msra.mxu0 %v175
    %196 = vmatprep.subr.bf16.mxu0 0
    %197 = vmatpush1.bf16.xpose.msra.mxu0 %v176
    %198 = vmatprep.subr.bf16.mxu0 0
    %199 = vmatpush1.bf16.xpose.msra.mxu0 %v177
    %200 = vmatprep.subr.bf16.mxu0 0
    %201 = vmatpush1.bf16.xpose.msra.mxu0 %v178
    %202 = vmatprep.subr.bf16.mxu0 0
    %203 = vmatpush1.bf16.xpose.msra.mxu0 %v179
    %204 = vmatprep.subr.bf16.mxu0 0
    %205 = vmatpush1.bf16.xpose.msra.mxu0 0
    %206 = vmatprep.subr.bf16.mxu0 0
    %207 = vmatpush1.bf16.xpose.msra.mxu0 0
    %208 = vmatprep.subr.bf16.mxu0 0
    %209 = vmatpush1.bf16.xpose.msra.mxu0 0
    %210 = vmatprep.subr.bf16.mxu0 0
    %211 = vmatpush1.bf16.xpose.msra.mxu0 0
    %212 = vmatprep.subr.bf16.mxu0 0
    %213 = vmatpush1.bf16.xpose.msra.mxu0 0
    %214 = vmatprep.subr.bf16.mxu0 0
    %215 = vmatpush1.bf16.xpose.msra.mxu0 0
    %216 = vmatprep.subr.bf16.mxu0 0
    %217 = vmatpush1.bf16.xpose.msra.mxu0 0
    %218 = vmatprep.subr.bf16.mxu0 0
    %219 = vmatpush1.bf16.xpose.msra.mxu0 0
    %220 = vmatprep.mubr.bf16.mxu0 0
    %221 = vmatmul.mubr.bf16.gmra.mrb[0].mxu0 %v123
    %v222 = vpop.f32.mrb[0].mxu0
    %v223 = vadd.f32 0.0, %v222
    %v224 = vpop.f32.mrb[0].mxu0
    %v225 = vpop.f32.mrb[0].mxu0
    %v226 = vpop.f32.mrb[0].mxu0
    %227 = vdwg.mxu0
    %228 = vset.pattern.permute.xlu0 0
    %229 = vperm.xlu0 %228, %v122
    %v230 = vpop.permute.xlu0 %229
    %v231 = vadd.s32 %v230, %v50
    %vm232 = vcmp.eq.s32.totalorder %v103, %v231
    %vm233 = vcmp.eq.s32.totalorder %v104, %v231
    %v234 = vsel %vm232, 1, 0
    %v235 = vsel %vm233, 1, 0
    %v236 = vcvt.s32.f32 %v234
    %v237 = vcvt.s32.f32 %v235
    %vm238 = vcmask 31744
    %v240 = vsel %vm238, %v236, 0
    %v243 = vsel %vm238, %v237, 0
    %vm245 = vcmask 1043456
    %v247 = vsel %vm245, %v223, 0
    %249 = vmatprep.subr.mxu0 0.0
    %250 = vmatpush1.msra.mxu0 %v247
    %251 = vmatprep.subr.mxu0 0.0
    %252 = vmatpush1.msra.mxu0 0.0
    %253 = vmatprep.subr.mxu0 0.0
    %254 = vmatpush1.msra.mxu0 0.0
    %255 = vmatprep.subr.mxu0 0.0
    %256 = vmatpush1.msra.mxu0 0.0
    %257 = vmatprep.subr.mxu0 0.0
    %258 = vmatpush1.msra.mxu0 0.0
    %259 = vmatprep.subr.mxu0 0.0
    %260 = vmatpush1.msra.mxu0 0.0
    %261 = vmatprep.subr.mxu0 0.0
    %262 = vmatpush1.msra.mxu0 0.0
    %263 = vmatprep.subr.mxu0 0.0
    %264 = vmatpush1.msra.mxu0 0.0
    %265 = vmatprep.subr.mxu0 0.0
    %266 = vmatpush1.msra.mxu0 0.0
    %267 = vmatprep.subr.mxu0 0.0
    %268 = vmatpush1.msra.mxu0 0.0
    %269 = vmatprep.subr.mxu0 0.0
    %270 = vmatpush1.msra.mxu0 0.0
    %271 = vmatprep.subr.mxu0 0.0
    %272 = vmatpush1.msra.mxu0 0.0
    %273 = vmatprep.subr.mxu0 0.0
    %274 = vmatpush1.msra.mxu0 0.0
    %275 = vmatprep.subr.mxu0 0.0
    %276 = vmatpush1.msra.mxu0 0.0
    %277 = vmatprep.subr.mxu0 0.0
    %278 = vmatpush1.msra.mxu0 0.0
    %279 = vmatprep.subr.mxu0 0.0
    %280 = vmatpush1.msra.mxu0 0.0
    %281 = vmatprep.subr.mxu0 0.0
    %282 = vmatpush1.msra.mxu0 0.0
    %283 = vmatprep.subr.mxu0 0.0
    %284 = vmatpush1.msra.mxu0 0.0
    %285 = vmatprep.subr.mxu0 0.0
    %286 = vmatpush1.msra.mxu0 0.0
    %287 = vmatprep.subr.mxu0 0.0
    %288 = vmatpush1.msra.mxu0 0.0
    %289 = vmatprep.subr.mxu0 0.0
    %290 = vmatpush1.msra.mxu0 0.0
    %291 = vmatprep.subr.mxu0 0.0
    %292 = vmatpush1.msra.mxu0 0.0
    %293 = vmatprep.subr.mxu0 0.0
    %294 = vmatpush1.msra.mxu0 0.0
    %295 = vmatprep.subr.mxu0 0.0
    %296 = vmatpush1.msra.mxu0 0.0
    %297 = vmatprep.subr.mxu0 0.0
    %298 = vmatpush1.msra.mxu0 0.0
    %299 = vmatprep.subr.mxu0 0.0
    %300 = vmatpush1.msra.mxu0 0.0
    %301 = vmatprep.subr.mxu0 0.0
    %302 = vmatpush1.msra.mxu0 0.0
    %303 = vmatprep.subr.mxu0 0.0
    %304 = vmatpush1.msra.mxu0 0.0
    %305 = vmatprep.subr.mxu0 0.0
    %306 = vmatpush1.msra.mxu0 0.0
    %307 = vmatprep.subr.mxu0 0.0
    %308 = vmatpush1.msra.mxu0 0.0
    %309 = vmatprep.subr.mxu0 0.0
    %310 = vmatpush1.msra.mxu0 0.0
    %311 = vmatprep.subr.mxu0 0.0
    %312 = vmatpush1.msra.mxu0 0.0
    %313 = vmatprep.mubr.f32.mxu0 0.0
    %314 = vmatmul.mubr.f32.gmra.mrb[0].mxu0 %v240
    %v315 = vpop.f32.mrb[0].mxu0
    %v316 = vadd.f32 0.0, %v315
    %v317 = vpop.f32.mrb[0].mxu0
    %318 = vmatprep.mubr.f32.mxu0 0.0
    %319 = vmatmul.mubr.f32.gmra.mrb[0].mxu0 %v243
    %v320 = vpop.f32.mrb[0].mxu0
    %v321 = vadd.f32 0.0, %v320
    %v322 = vpop.f32.mrb[0].mxu0
    %323 = vdwg.mxu0
    %324 = vmatprep.subr.mxu0 0.0
    %325 = vmatpush1.msra.mxu0 %v70
    %326 = vmatprep.subr.mxu0 0.0
    %327 = vmatpush1.msra.mxu0 %v71
    %328 = vmatprep.subr.mxu0 0.0
    %329 = vmatpush1.msra.mxu0 %v72
    %330 = vmatprep.subr.mxu0 0.0
    %331 = vmatpush1.msra.mxu0 %v73
    %332 = vmatprep.subr.mxu0 0.0
    %333 = vmatpush1.msra.mxu0 %v74
    %334 = vmatprep.subr.mxu0 0.0
    %335 = vmatpush1.msra.mxu0 %v75
    %336 = vmatprep.subr.mxu0 0.0
    %337 = vmatpush1.msra.mxu0 %v76
    %338 = vmatprep.subr.mxu0 0.0
    %339 = vmatpush1.msra.mxu0 %v77
    %340 = vmatprep.subr.mxu0 0.0
    %341 = vmatpush1.msra.mxu0 %v78
    %342 = vmatprep.subr.mxu0 0.0
    %343 = vmatpush1.msra.mxu0 %v79
    %344 = vmatprep.subr.mxu0 0.0
    %345 = vmatpush1.msra.mxu0 %v80
    %346 = vmatprep.subr.mxu0 0.0
    %347 = vmatpush1.msra.mxu0 %v81
    %348 = vmatprep.subr.mxu0 0.0
    %349 = vmatpush1.msra.mxu0 %v82
    %350 = vmatprep.subr.mxu0 0.0
    %351 = vmatpush1.msra.mxu0 %v83
    %352 = vmatprep.subr.mxu0 0.0
    %353 = vmatpush1.msra.mxu0 %v84
    %354 = vmatprep.subr.mxu0 0.0
    %355 = vmatpush1.msra.mxu0 %v85
    %356 = vmatprep.subr.mxu0 0.0
    %357 = vmatpush1.msra.mxu0 %v86
    %358 = vmatprep.subr.mxu0 0.0
    %359 = vmatpush1.msra.mxu0 %v87
    %360 = vmatprep.subr.mxu0 0.0
    %361 = vmatpush1.msra.mxu0 %v88
    %362 = vmatprep.subr.mxu0 0.0
    %363 = vmatpush1.msra.mxu0 %v89
    %364 = vmatprep.subr.mxu0 0.0
    %365 = vmatpush1.msra.mxu0 %v90
    %366 = vmatprep.subr.mxu0 0.0
    %367 = vmatpush1.msra.mxu0 %v91
    %368 = vmatprep.subr.mxu0 0.0
    %369 = vmatpush1.msra.mxu0 %v92
    %370 = vmatprep.subr.mxu0 0.0
    %371 = vmatpush1.msra.mxu0 %v93
    %372 = vmatprep.subr.mxu0 0.0
    %373 = vmatpush1.msra.mxu0 %v94
    %374 = vmatprep.subr.mxu0 0.0
    %375 = vmatpush1.msra.mxu0 %v95
    %376 = vmatprep.subr.mxu0 0.0
    %377 = vmatpush1.msra.mxu0 %v96
    %378 = vmatprep.subr.mxu0 0.0
    %379 = vmatpush1.msra.mxu0 %v97
    %380 = vmatprep.subr.mxu0 0.0
    %381 = vmatpush1.msra.mxu0 %v98
    %382 = vmatprep.subr.mxu0 0.0
    %383 = vmatpush1.msra.mxu0 %v99
    %384 = vmatprep.subr.mxu0 0.0
    %385 = vmatpush1.msra.mxu0 %v100
    %386 = vmatprep.subr.mxu0 0.0
    %387 = vmatpush1.msra.mxu0 %v101
    %388 = vmatprep.mubr.f32.mxu0 %v67
    %389 = vmatmul.mubr.f32.gmra.mrb[0].mxu0 %v66
    %v390 = vpop.f32.mrb[0].mxu0
    %v391 = vadd.f32 %v316, %v390
    %v392 = vpop.f32.mrb[0].mxu0
    %393 = vmatprep.mubr.f32.mxu0 %v69
    %394 = vmatmul.mubr.f32.gmra.mrb[0].mxu0 %v68
    %v395 = vpop.f32.mrb[0].mxu0
    %v396 = vadd.f32 %v321, %v395
    %v397 = vpop.f32.mrb[0].mxu0
    %398 = vdwg.mxu0
    %399 = vst [vmem:[#allocation7] sm:$0xff] %v391
    %400 = vst [vmem:[#allocation7 + $0x8] sm:$0xff] %v396
    %s401 = scalar_lea.vmem %s0, 16
    %v402 = vld [vmem:[%s401] sm:$0xff]
    %v403 = vld [vmem:[%s401 + $0x8] sm:$0xff]
    %404 = vset.pattern.permute.xlu0 0
    %405 = vperm.xlu0 %404, %v402
    %v406 = vpop.permute.xlu0 %405
    %407 = vset.pattern.permute.xlu0 0
    %408 = vperm.xlu0 %407, %v403
    %v409 = vpop.permute.xlu0 %408
    %vm410 = vcmp.eq.s32.totalorder %v50, %v406
    %vm411 = vcmp.eq.s32.totalorder %v51, %v406
    %vm412 = vcmp.eq.s32.totalorder %v50, %v409
    %vm413 = vcmp.eq.s32.totalorder %v51, %v409
    %v414 = vsel %vm410, 1, 0
    %v415 = vsel %vm411, 1, 0
    %v416 = vsel %vm412, 1, 0
    %v417 = vsel %vm413, 1, 0
    %v418 = vcvt.s32.f32 %v414
    %v419 = vcvt.s32.f32 %v415
    %v420 = vcvt.s32.f32 %v416
    %v421 = vcvt.s32.f32 %v417
    %v422 = vld [vmem:[#allocation5] sm:$0xff]
    %v423 = vld [vmem:[#allocation5 + $0x8] sm:$0xff]
    %v424 = vld [vmem:[#allocation5 + $0x10] sm:$0xff]
    %v425 = vld [vmem:[#allocation5 + $0x18] sm:$0xff]
    %v426 = vld [vmem:[#allocation5 + $0x20] sm:$0xff]
    %v427 = vld [vmem:[#allocation5 + $0x28] sm:$0xff]
    %v428 = vld [vmem:[#allocation5 + $0x30] sm:$0xff]
    %v429 = vld [vmem:[#allocation5 + $0x38] sm:$0xff]
    %v430 = vld [vmem:[#allocation5 + $0x40] sm:$0xff]
    %v431 = vld [vmem:[#allocation5 + $0x48] sm:$0xff]
    %v432 = vld [vmem:[#allocation5 + $0x50] sm:$0xff]
    %v433 = vld [vmem:[#allocation5 + $0x58] sm:$0xff]
    %v434 = vld [vmem:[#allocation5 + $0x60] sm:$0xff]
    %v435 = vld [vmem:[#allocation5 + $0x68] sm:$0xff]
    %v436 = vld [vmem:[#allocation5 + $0x70] sm:$0xff]
    %v437 = vld [vmem:[#allocation5 + $0x78] sm:$0xff]
    %v438 = vld [vmem:[#allocation5 + $0x80] sm:$0xff]
    %v439 = vld [vmem:[#allocation5 + $0x88] sm:$0xff]
    %v440 = vld [vmem:[#allocation5 + $0x90] sm:$0xff]
    %v441 = vld [vmem:[#allocation5 + $0x98] sm:$0xff]
    %v442 = vld [vmem:[#allocation5 + $0xa0] sm:$0xff]
    %v443 = vld [vmem:[#allocation5 + $0xa8] sm:$0xff]
    %v444 = vld [vmem:[#allocation5 + $0xb0] sm:$0xff]
    %v445 = vld [vmem:[#allocation5 + $0xb8] sm:$0xff]
    %v446 = vld [vmem:[#allocation5 + $0xc0] sm:$0xff]
    %v447 = vld [vmem:[#allocation5 + $0xc8] sm:$0xff]
    %v448 = vld [vmem:[#allocation5 + $0xd0] sm:$0xff]
    %v449 = vld [vmem:[#allocation5 + $0xd8] sm:$0xff]
    %v450 = vld [vmem:[#allocation5 + $0xe0] sm:$0xff]
    %v451 = vld [vmem:[#allocation5 + $0xe8] sm:$0xff]
    %v452 = vld [vmem:[#allocation5 + $0xf0] sm:$0xff]
    %v453 = vld [vmem:[#allocation5 + $0xf8] sm:$0xff]
    %vm454 = vcmp.eq.s32.totalorder %v402, 4294967295
    %vm455 = vcmp.eq.s32.totalorder %v403, 4294967295
    %v456 = vsel %vm454, %v103, 16
    %v457 = vsel %vm455, %v104, 16
    %v458 = vsel %vm109, %v456, 2147483647
    %v459 = vsel %vm109, %v457, 2147483647
    %vm460 = vcmp.lt.s32.totalorder %v458, %v459
    %v461 = vsel %vm460, %v458, %v459
    %v462 = vrot.slane %v461, 4
    %vm463 = vcmp.lt.s32.totalorder %v461, %v462
    %v464 = vsel %vm463, %v461, %v462
    %v465 = vrot.slane %v464, 2
    %vm466 = vcmp.lt.s32.totalorder %v464, %v465
    %v467 = vsel %vm466, %v464, %v465
    %v468 = vrot.slane %v467, 1
    %vm469 = vcmp.lt.s32.totalorder %v467, %v468
    %v470 = vsel %vm469, %v467, %v468
    %s471 = scalar_lea.vmem %s1, 2
    %v472 = vld [vmem:[%s471] sm:$0x3]
    %v473 = vld [vmem:[#allocation2] sm:$0xf]
    %v474 = vld [vmem:[#allocation2 + $0x4] sm:$0xf]
    %v475 = vld [vmem:[#allocation2 + $0x8] sm:$0xf]
    %v476 = vld [vmem:[#allocation2 + $0xc] sm:$0xf]
    %v477 = vld [vmem:[#allocation2 + $0x10] sm:$0xf]
    %v478 = vld [vmem:[#allocation2 + $0x14] sm:$0xf]
    %v479 = vld [vmem:[#allocation2 + $0x18] sm:$0xf]
    %v480 = vld [vmem:[#allocation2 + $0x1c] sm:$0xf]
    %v481 = vld [vmem:[#allocation2 + $0x20] sm:$0xf]
    %v482 = vld [vmem:[#allocation2 + $0x24] sm:$0xf]
    %v483 = vld [vmem:[#allocation2 + $0x28] sm:$0xf]
    %v484 = vld [vmem:[#allocation2 + $0x2c] sm:$0xf]
    %v485 = vld [vmem:[#allocation2 + $0x30] sm:$0xf]
    %v486 = vld [vmem:[#allocation2 + $0x34] sm:$0xf]
    %v487 = vld [vmem:[#allocation2 + $0x38] sm:$0xf]
    %v488 = vld [vmem:[#allocation2 + $0x3c] sm:$0xf]
    %v505 = vunpack.c.l.b16 %v473
    %v506 = vunpack.c.l.b16 %v474
    %v507 = vunpack.c.l.b16 %v475
    %v508 = vunpack.c.l.b16 %v476
    %v509 = vunpack.c.l.b16 %v477
    %v510 = vunpack.c.l.b16 %v478
    %v511 = vunpack.c.l.b16 %v479
    %v512 = vunpack.c.l.b16 %v480
    %v513 = vunpack.c.l.b16 %v481
    %v514 = vunpack.c.l.b16 %v482
    %v515 = vunpack.c.l.b16 %v483
    %v516 = vunpack.c.l.b16 %v484
    %v517 = vunpack.c.l.b16 %v485
    %v518 = vunpack.c.l.b16 %v486
    %v519 = vunpack.c.l.b16 %v487
    %v520 = vunpack.c.l.b16 %v488
    %v521 = vpack.c.b16 %v506, %v505
    %v522 = vpack.c.b16 %v508, %v507
    %v523 = vpack.c.b16 %v510, %v509
    %v524 = vpack.c.b16 %v512, %v511
    %v525 = vpack.c.b16 %v514, %v513
    %v526 = vpack.c.b16 %v516, %v515
    %v527 = vpack.c.b16 %v518, %v517
    %v528 = vpack.c.b16 %v520, %v519
    %537 = vmatprep.subr.bf16.mxu0 0
    %538 = vmatpush1.bf16.xpose.msra.mxu0 %v521
    %539 = vmatprep.subr.bf16.mxu0 0
    %540 = vmatpush1.bf16.xpose.msra.mxu0 %v522
    %541 = vmatprep.subr.bf16.mxu0 0
    %542 = vmatpush1.bf16.xpose.msra.mxu0 %v523
    %543 = vmatprep.subr.bf16.mxu0 0
    %544 = vmatpush1.bf16.xpose.msra.mxu0 %v524
    %545 = vmatprep.subr.bf16.mxu0 0
    %546 = vmatpush1.bf16.xpose.msra.mxu0 %v525
    %547 = vmatprep.subr.bf16.mxu0 0
    %548 = vmatpush1.bf16.xpose.msra.mxu0 %v526
    %549 = vmatprep.subr.bf16.mxu0 0
    %550 = vmatpush1.bf16.xpose.msra.mxu0 %v527
    %551 = vmatprep.subr.bf16.mxu0 0
    %552 = vmatpush1.bf16.xpose.msra.mxu0 %v528
    %553 = vmatprep.subr.bf16.mxu0 0
    %554 = vmatpush1.bf16.xpose.msra.mxu0 0
    %555 = vmatprep.subr.bf16.mxu0 0
    %556 = vmatpush1.bf16.xpose.msra.mxu0 0
    %557 = vmatprep.subr.bf16.mxu0 0
    %558 = vmatpush1.bf16.xpose.msra.mxu0 0
    %559 = vmatprep.subr.bf16.mxu0 0
    %560 = vmatpush1.bf16.xpose.msra.mxu0 0
    %561 = vmatprep.subr.bf16.mxu0 0
    %562 = vmatpush1.bf16.xpose.msra.mxu0 0
    %563 = vmatprep.subr.bf16.mxu0 0
    %564 = vmatpush1.bf16.xpose.msra.mxu0 0
    %565 = vmatprep.subr.bf16.mxu0 0
    %566 = vmatpush1.bf16.xpose.msra.mxu0 0
    %567 = vmatprep.subr.bf16.mxu0 0
    %568 = vmatpush1.bf16.xpose.msra.mxu0 0
    %569 = vmatprep.mubr.bf16.mxu0 0
    %570 = vmatmul.mubr.bf16.gmra.mrb[0].mxu0 %v472
    %v571 = vpop.f32.mrb[0].mxu0
    %v572 = vadd.f32 0.0, %v571
    %v573 = vpop.f32.mrb[0].mxu0
    %v574 = vpop.f32.mrb[0].mxu0
    %v575 = vpop.f32.mrb[0].mxu0
    %576 = vdwg.mxu0
    %577 = vset.pattern.permute.xlu0 0
    %578 = vperm.xlu0 %577, %v470
    %v579 = vpop.permute.xlu0 %578
    %v580 = vadd.s32 %v579, %v50
    %vm581 = vcmp.eq.s32.totalorder %v103, %v580
    %vm582 = vcmp.eq.s32.totalorder %v104, %v580
    %v583 = vsel %vm581, 1, 0
    %v584 = vsel %vm582, 1, 0
    %v585 = vcvt.s32.f32 %v583
    %v586 = vcvt.s32.f32 %v584
    %v588 = vsel %vm238, %v585, 0
    %v591 = vsel %vm238, %v586, 0
    %v594 = vsel %vm245, %v572, 0
    %596 = vmatprep.subr.mxu0 0.0
    %597 = vmatpush1.msra.mxu0 %v594
    %598 = vmatprep.subr.mxu0 0.0
    %599 = vmatpush1.msra.mxu0 0.0
    %600 = vmatprep.subr.mxu0 0.0
    %601 = vmatpush1.msra.mxu0 0.0
    %602 = vmatprep.subr.mxu0 0.0
    %603 = vmatpush1.msra.mxu0 0.0
    %604 = vmatprep.subr.mxu0 0.0
    %605 = vmatpush1.msra.mxu0 0.0
    %606 = vmatprep.subr.mxu0 0.0
    %607 = vmatpush1.msra.mxu0 0.0
    %608 = vmatprep.subr.mxu0 0.0
    %609 = vmatpush1.msra.mxu0 0.0
    %610 = vmatprep.subr.mxu0 0.0
    %611 = vmatpush1.msra.mxu0 0.0
    %612 = vmatprep.subr.mxu0 0.0
    %613 = vmatpush1.msra.mxu0 0.0
    %614 = vmatprep.subr.mxu0 0.0
    %615 = vmatpush1.msra.mxu0 0.0
    %616 = vmatprep.subr.mxu0 0.0
    %617 = vmatpush1.msra.mxu0 0.0
    %618 = vmatprep.subr.mxu0 0.0
    %619 = vmatpush1.msra.mxu0 0.0
    %620 = vmatprep.subr.mxu0 0.0
    %621 = vmatpush1.msra.mxu0 0.0
    %622 = vmatprep.subr.mxu0 0.0
    %623 = vmatpush1.msra.mxu0 0.0
    %624 = vmatprep.subr.mxu0 0.0
    %625 = vmatpush1.msra.mxu0 0.0
    %626 = vmatprep.subr.mxu0 0.0
    %627 = vmatpush1.msra.mxu0 0.0
    %628 = vmatprep.subr.mxu0 0.0
    %629 = vmatpush1.msra.mxu0 0.0
    %630 = vmatprep.subr.mxu0 0.0
    %631 = vmatpush1.msra.mxu0 0.0
    %632 = vmatprep.subr.mxu0 0.0
    %633 = vmatpush1.msra.mxu0 0.0
    %634 = vmatprep.subr.mxu0 0.0
    %635 = vmatpush1.msra.mxu0 0.0
    %636 = vmatprep.subr.mxu0 0.0
    %637 = vmatpush1.msra.mxu0 0.0
    %638 = vmatprep.subr.mxu0 0.0
    %639 = vmatpush1.msra.mxu0 0.0
    %640 = vmatprep.subr.mxu0 0.0
    %641 = vmatpush1.msra.mxu0 0.0
    %642 = vmatprep.subr.mxu0 0.0
    %643 = vmatpush1.msra.mxu0 0.0
    %644 = vmatprep.subr.mxu0 0.0
    %645 = vmatpush1.msra.mxu0 0.0
    %646 = vmatprep.subr.mxu0 0.0
    %647 = vmatpush1.msra.mxu0 0.0
    %648 = vmatprep.subr.mxu0 0.0
    %649 = vmatpush1.msra.mxu0 0.0
    %650 = vmatprep.subr.mxu0 0.0
    %651 = vmatpush1.msra.mxu0 0.0
    %652 = vmatprep.subr.mxu0 0.0
    %653 = vmatpush1.msra.mxu0 0.0
    %654 = vmatprep.subr.mxu0 0.0
    %655 = vmatpush1.msra.mxu0 0.0
    %656 = vmatprep.subr.mxu0 0.0
    %657 = vmatpush1.msra.mxu0 0.0
    %658 = vmatprep.subr.mxu0 0.0
    %659 = vmatpush1.msra.mxu0 0.0
    %660 = vmatprep.mubr.f32.mxu0 0.0
    %661 = vmatmul.mubr.f32.gmra.mrb[0].mxu0 %v588
    %v662 = vpop.f32.mrb[0].mxu0
    %v663 = vadd.f32 0.0, %v662
    %v664 = vpop.f32.mrb[0].mxu0
    %665 = vmatprep.mubr.f32.mxu0 0.0
    %666 = vmatmul.mubr.f32.gmra.mrb[0].mxu0 %v591
    %v667 = vpop.f32.mrb[0].mxu0
    %v668 = vadd.f32 0.0, %v667
    %v669 = vpop.f32.mrb[0].mxu0
    %670 = vdwg.mxu0
    %671 = vmatprep.subr.mxu0 0.0
    %672 = vmatpush1.msra.mxu0 %v422
    %673 = vmatprep.subr.mxu0 0.0
    %674 = vmatpush1.msra.mxu0 %v423
    %675 = vmatprep.subr.mxu0 0.0
    %676 = vmatpush1.msra.mxu0 %v424
    %677 = vmatprep.subr.mxu0 0.0
    %678 = vmatpush1.msra.mxu0 %v425
    %679 = vmatprep.subr.mxu0 0.0
    %680 = vmatpush1.msra.mxu0 %v426
    %681 = vmatprep.subr.mxu0 0.0
    %682 = vmatpush1.msra.mxu0 %v427
    %683 = vmatprep.subr.mxu0 0.0
    %684 = vmatpush1.msra.mxu0 %v428
    %685 = vmatprep.subr.mxu0 0.0
    %686 = vmatpush1.msra.mxu0 %v429
    %687 = vmatprep.subr.mxu0 0.0
    %688 = vmatpush1.msra.mxu0 %v430
    %689 = vmatprep.subr.mxu0 0.0
    %690 = vmatpush1.msra.mxu0 %v431
    %691 = vmatprep.subr.mxu0 0.0
    %692 = vmatpush1.msra.mxu0 %v432
    %693 = vmatprep.subr.mxu0 0.0
    %694 = vmatpush1.msra.mxu0 %v433
    %695 = vmatprep.subr.mxu0 0.0
    %696 = vmatpush1.msra.mxu0 %v434
    %697 = vmatprep.subr.mxu0 0.0
    %698 = vmatpush1.msra.mxu0 %v435
    %699 = vmatprep.subr.mxu0 0.0
    %700 = vmatpush1.msra.mxu0 %v436
    %701 = vmatprep.subr.mxu0 0.0
    %702 = vmatpush1.msra.mxu0 %v437
    %703 = vmatprep.subr.mxu0 0.0
    %704 = vmatpush1.msra.mxu0 %v438
    %705 = vmatprep.subr.mxu0 0.0
    %706 = vmatpush1.msra.mxu0 %v439
    %707 = vmatprep.subr.mxu0 0.0
    %708 = vmatpush1.msra.mxu0 %v440
    %709 = vmatprep.subr.mxu0 0.0
    %710 = vmatpush1.msra.mxu0 %v441
    %711 = vmatprep.subr.mxu0 0.0
    %712 = vmatpush1.msra.mxu0 %v442
    %713 = vmatprep.subr.mxu0 0.0
    %714 = vmatpush1.msra.mxu0 %v443
    %715 = vmatprep.subr.mxu0 0.0
    %716 = vmatpush1.msra.mxu0 %v444
    %717 = vmatprep.subr.mxu0 0.0
    %718 = vmatpush1.msra.mxu0 %v445
    %719 = vmatprep.subr.mxu0 0.0
    %720 = vmatpush1.msra.mxu0 %v446
    %721 = vmatprep.subr.mxu0 0.0
    %722 = vmatpush1.msra.mxu0 %v447
    %723 = vmatprep.subr.mxu0 0.0
    %724 = vmatpush1.msra.mxu0 %v448
    %725 = vmatprep.subr.mxu0 0.0
    %726 = vmatpush1.msra.mxu0 %v449
    %727 = vmatprep.subr.mxu0 0.0
    %728 = vmatpush1.msra.mxu0 %v450
    %729 = vmatprep.subr.mxu0 0.0
    %730 = vmatpush1.msra.mxu0 %v451
    %731 = vmatprep.subr.mxu0 0.0
    %732 = vmatpush1.msra.mxu0 %v452
    %733 = vmatprep.subr.mxu0 0.0
    %734 = vmatpush1.msra.mxu0 %v453
    %735 = vmatprep.mubr.f32.mxu0 %v419
    %736 = vmatmul.mubr.f32.gmra.mrb[0].mxu0 %v418
    %v737 = vpop.f32.mrb[0].mxu0
    %v738 = vadd.f32 %v663, %v737
    %v739 = vpop.f32.mrb[0].mxu0
    %740 = vmatprep.mubr.f32.mxu0 %v421
    %741 = vmatmul.mubr.f32.gmra.mrb[0].mxu0 %v420
    %v742 = vpop.f32.mrb[0].mxu0
    %v743 = vadd.f32 %v668, %v742
    %v744 = vpop.f32.mrb[0].mxu0
    %745 = vdwg.mxu0
    %s746 = scalar_lea.vmem [#allocation7], 16
    %747 = vst [vmem:[%s746] sm:$0xff] %v738
    %748 = vst [vmem:[%s746 + $0x8] sm:$0xff] %v743
    // Predicated region
    $region26: #{tpu_custom_call.1} parent=1 // pred_check
      _
    $region27: #{tpu_custom_call.1} parent=1 // pred_check_branch
      %750 = sbr.rel (0) target = $region29
    $region28: #{tpu_custom_call.1} parent=1 // pred_region
      %s752 = ssub.s32 512, 512
      %753 = vsyncadd [#allocation4], %s752
      %s754 = sshll.u32 [#allocation7], 4
      %s755 = int_to_ptr.vmem [resolvable:$true] %s754
      %760 = dma.vmem_to_hbm [thread:$0]  %s755, 512, %s4, [#allocation4], 128, 128, 8
    $region29: #{tpu_custom_call.1} parent=1 // pred_fallthru
      _
    // Predicated region
    $region30: #{tpu_custom_call.1} parent=1 // pred_check
      _
    $region31: #{tpu_custom_call.1} parent=1 // pred_check_branch
      %762 = sbr.rel (0) target = $region33
    $region32: #{tpu_custom_call.1} parent=1 // pred_region
      %763 = dma.done [#allocation4], 512
    $region33: #{tpu_custom_call.1} parent=1 // pred_fallthru
      _
    %764 = vsyncpa [#allocation3], 1
    %765 = vsyncpa [#allocation6], 1
    %766 = vsyncpa [#allocation4], 1

</llo_original>
